<compile_context>
chip_gen: v6e
topology: v6e:2x2x1
jax: 0.10.0
libtpu: 0.0.40
codegen_flags: <defaults>
</compile_context>

<pallas_src>
import functools
import math

import jax
import jax.numpy as jnp
from jax import lax
from jax.experimental import pallas as pl
from jax.experimental.pallas import tpu as pltpu


# ----------------------------- Pallas kernel --------------------------------
def _attn_kernel(q_ref, k_ref, v_ref, o_ref, *, scale, mask_flag):
    """One grid step: batched attention for G (batch, head) pairs.

    q_ref: (G, L, E)   k_ref: (G, S, E)   v_ref: (G, S, D)
    o_ref: (1, L, G*D)  -- lane-dense output slab for this group of heads.
    """
    G, L, _ = q_ref.shape
    S = k_ref.shape[1]
    D = v_ref.shape[2]

    q = q_ref[...]
    k = k_ref[...]
    v = v_ref[...]

    # Scores for all G heads in one batched MXU einsum, f32 accumulation.
    s = jnp.einsum("gle,gse->gls", q, k,
                   preferred_element_type=jnp.float32) * scale      # (G, L, S)

    if mask_flag:
        # TriangularCausalMask: positions j > i are masked with -inf.
        row = lax.broadcasted_iota(jnp.int32, (G, L, S), 1)
        col = lax.broadcasted_iota(jnp.int32, (G, L, S), 2)
        s = jnp.where(col > row, -jnp.inf, s)

    # Numerically stable softmax over the key axis, batched across heads.
    m = jnp.max(s, axis=-1, keepdims=True)
    p = jnp.exp(s - m)
    l = jnp.sum(p, axis=-1, keepdims=True)
    a = (p / l).astype(v.dtype)                                      # (G, L, S)

    # Attention-weighted values for all heads, f32 accumulation.
    o = jnp.einsum("gls,gsd->gld", a, v,
                   preferred_element_type=jnp.float32)               # (G, L, D)

    # Pack heads along the lane axis of the (L, G*D) output block so the
    # per-step HBM writeback is a dense, full-width tile.
    for g in range(G):
        o_ref[0, :, g * D:(g + 1) * D] = o[g].astype(o_ref.dtype)


# ------------------------------ wrapper --------------------------------------
def _pick_heads_per_block(bh, d):
    """Smallest divisor G of bh with G*d >= 128 lanes, keeping >= 2 grid steps."""
    best = 1
    for g in range(1, bh + 1):
        if bh % g == 0 and bh // g >= 2:
            best = g
            if g * d >= 128:
                break
    return best


@functools.partial(jax.jit,
                   static_argnames=("mask_flag", "scale", "heads_per_block"))
def full_attention(queries, keys, values, mask_flag=True, scale=None,
                   heads_per_block=None):
    """queries (B,L,H,E), keys (B,S,H,E), values (B,S,H,D) -> (V, None)."""
    B, L, H, E = queries.shape
    _, S, _, D = values.shape
    sc = float(scale) if scale is not None else 1.0 / math.sqrt(E)

    BH = B * H
    G = heads_per_block if heads_per_block is not None else _pick_heads_per_block(BH, D)
    assert BH % G == 0
    NG = BH // G
    # NOTE: for large L/S/D re-derive G against the scoped VMEM budget
    # (~32 MiB default; v7x has 64 MiB physical) and set vmem_limit_bytes.

    # (B, L, H, E) -> (B*H, L, E): contiguous per-(batch, head) tiles.
    qf = queries.transpose(0, 2, 1, 3).reshape(BH, L, E)
    kf = keys.transpose(0, 2, 1, 3).reshape(BH, S, E)
    vf = values.transpose(0, 2, 1, 3).reshape(BH, S, D)

    kernel = functools.partial(_attn_kernel, scale=sc, mask_flag=mask_flag)

    out = pl.pallas_call(
        kernel,
        out_shape=jax.ShapeDtypeStruct((NG, L, G * D), queries.dtype),
        grid_spec=pltpu.PrefetchScalarGridSpec(
            num_scalar_prefetch=0,
            grid=(NG,),
            in_specs=[
                pl.BlockSpec((G, L, E), lambda n: (n, 0, 0)),   # Q group
                pl.BlockSpec((G, S, E), lambda n: (n, 0, 0)),   # K group
                pl.BlockSpec((G, S, D), lambda n: (n, 0, 0)),   # V group
            ],
            out_specs=pl.BlockSpec((1, L, G * D), lambda n: (n, 0, 0)),
        ),
        compiler_params=pltpu.CompilerParams(
            dimension_semantics=("parallel",)),
    )(qf, kf, vf)

    # (NG, L, G*D) -> (B, L, H, D)
    out = out.reshape(NG, L, G, D).transpose(0, 2, 1, 3).reshape(B, H, L, D)
    out = out.transpose(0, 2, 1, 3)
    return out, None   # output_attention=False


# --------------------------- pure-JAX reference ------------------------------
def reference(queries, keys, values, mask_flag=True, scale=None):
    B, L, H, E = queries.shape
    _, S, _, D = values.shape
    sc = scale if scale is not None else 1.0 / math.sqrt(E)
    scores = jnp.einsum("blhe,bshe->bhls", queries, keys)
    if mask_flag:
        mask = jnp.triu(jnp.ones((L, S), dtype=bool), k=1)
        scores = jnp.where(mask[None, None], -jnp.inf, scores)
    A = jax.nn.softmax(sc * scores, axis=-1)
    return jnp.einsum("bhls,bshd->blhd", A, values)


if __name__ == "__main__":
    # Small shapes consistent with the module: B=2, L=S=16, H=4, E=D=32.
    B, L, H, E = 2, 16, 4, 32
    S, D = L, E

    key = jax.random.PRNGKey(0)
    kq, kk, kv = jax.random.split(key, 3)
    q = jax.random.normal(kq, (B, L, H, E), jnp.float32)
    k = jax.random.normal(kk, (B, S, H, E), jnp.float32)
    v = jax.random.normal(kv, (B, S, H, D), jnp.float32)

    out, attn = full_attention(q, k, v)
    out = jax.block_until_ready(out)

    expected = reference(q, k, v)
    assert out.shape == expected.shape == (B, L, H, D)
    max_err = float(jnp.max(jnp.abs(out - expected)))
    assert jnp.allclose(out, expected, atol=1e-4, rtol=1e-4), max_err

    print("KERNEL_OK")
</pallas_src>

<mosaic_0001>
module attributes {stable_mosaic.version = 11 : i64} {
  func.func @_attn_kernel(%arg0: i32, %arg1: memref<4x16x32xf32, #tpu.memory_space<vmem>>, %arg2: memref<4x16x32xf32, #tpu.memory_space<vmem>>, %arg3: memref<4x16x32xf32, #tpu.memory_space<vmem>>, %arg4: memref<1x16x128xf32, #tpu.memory_space<vmem>>) attributes {dimension_semantics = [#tpu.dimension_semantics<parallel>], iteration_bounds = array<i64: 2>, scalar_prefetch = 0 : i64, scratch_operands = 0 : i64, tpu.core_type = #tpu.core_type<tc>, window_params = [{transform_indices = @transform_0, window_bounds = array<i64: 4, 16, 32>}, {transform_indices = @transform_1, window_bounds = array<i64: 4, 16, 32>}, {transform_indices = @transform_2, window_bounds = array<i64: 4, 16, 32>}, {transform_indices = @transform_3, window_bounds = array<i64: 1, 16, 128>}]} {
    %c0 = arith.constant 0 : index
    %c0_0 = arith.constant 0 : index
    %c0_1 = arith.constant 0 : index
    %0 = vector.load %arg1[%c0, %c0_0, %c0_1] : memref<4x16x32xf32, #tpu.memory_space<vmem>>, vector<4x16x32xf32>
    %c0_2 = arith.constant 0 : index
    %c0_3 = arith.constant 0 : index
    %c0_4 = arith.constant 0 : index
    %1 = vector.load %arg2[%c0_2, %c0_3, %c0_4] : memref<4x16x32xf32, #tpu.memory_space<vmem>>, vector<4x16x32xf32>
    %c0_5 = arith.constant 0 : index
    %c0_6 = arith.constant 0 : index
    %c0_7 = arith.constant 0 : index
    %2 = vector.load %arg3[%c0_5, %c0_6, %c0_7] : memref<4x16x32xf32, #tpu.memory_space<vmem>>, vector<4x16x32xf32>
    "tpu.trace_start"() <{level = 10 : i32, message = "gle,gse->gls"}> : () -> ()
    %cst = arith.constant dense<0.000000e+00> : vector<4x16x16xf32>
    %3 = tpu.matmul %0, %1, %cst {dimension_numbers = #tpu.dot_dimension_numbers<[2], [2], [1], [1], [0, 0, 0, 1, 1, 1], [0], [0]>} : vector<4x16x32xf32>, vector<4x16x32xf32>, vector<4x16x16xf32> -> vector<4x16x16xf32>
    "tpu.trace_stop"() : () -> ()
    %cst_8 = arith.constant 0.176776692 : f32
    %4 = vector.broadcast %cst_8 : f32 to vector<4x16x16xf32>
    %5 = arith.mulf %3, %4 : vector<4x16x16xf32>
    %6 = tpu.iota {dimensions = array<i32: 1>} : vector<4x16x16xi32>
    %7 = tpu.iota {dimensions = array<i32: 2>} : vector<4x16x16xi32>
    %8 = arith.cmpi sgt, %7, %6 : vector<4x16x16xi32>
    %cst_9 = arith.constant 0xFF800000 : f32
    %9 = vector.broadcast %cst_9 : f32 to vector<4x16x16xf32>
    %10 = arith.select %8, %9, %5 : vector<4x16x16xi1>, vector<4x16x16xf32>
    %cst_10 = arith.constant dense<0xFF800000> : vector<4x16xf32>
    %11 = vector.multi_reduction <maximumf>, %10, %cst_10 [2] : vector<4x16x16xf32> to vector<4x16xf32>
    %12 = vector.shape_cast %11 : vector<4x16xf32> to vector<4x16x1xf32>
    %13 = vector.broadcast %12 : vector<4x16x1xf32> to vector<4x16x16xf32>
    %14 = arith.subf %10, %13 : vector<4x16x16xf32>
    %15 = math.exp %14 : vector<4x16x16xf32>
    %cst_11 = arith.constant dense<0.000000e+00> : vector<4x16xf32>
    %16 = vector.multi_reduction <add>, %15, %cst_11 [2] : vector<4x16x16xf32> to vector<4x16xf32>
    %17 = vector.shape_cast %16 : vector<4x16xf32> to vector<4x16x1xf32>
    %18 = vector.broadcast %17 : vector<4x16x1xf32> to vector<4x16x16xf32>
    %19 = arith.divf %15, %18 : vector<4x16x16xf32>
    "tpu.trace_start"() <{level = 10 : i32, message = "gls,gsd->gld"}> : () -> ()
    %cst_12 = arith.constant dense<0.000000e+00> : vector<4x16x32xf32>
    %20 = tpu.matmul %19, %2, %cst_12 {dimension_numbers = #tpu.dot_dimension_numbers<[2], [1], [1], [2], [0, 0, 0, 1, 1, 2], [0], [0]>} : vector<4x16x16xf32>, vector<4x16x32xf32>, vector<4x16x32xf32> -> vector<4x16x32xf32>
    "tpu.trace_stop"() : () -> ()
    %21 = vector.extract_strided_slice %20 {offsets = [0, 0, 0], sizes = [1, 16, 32], strides = [1, 1, 1]} : vector<4x16x32xf32> to vector<1x16x32xf32>
    %22 = vector.shape_cast %21 : vector<1x16x32xf32> to vector<16x32xf32>
    %c0_13 = arith.constant 0 : index
    %c0_14 = arith.constant 0 : index
    %c0_15 = arith.constant 0 : index
    %23 = vector.load %arg4[%c0_13, %c0_14, %c0_15] : memref<1x16x128xf32, #tpu.memory_space<vmem>>, vector<1x16x32xf32>
    %24 = vector.shape_cast %23 : vector<1x16x32xf32> to vector<16x32xf32>
    %25 = vector.shape_cast %22 : vector<16x32xf32> to vector<1x16x32xf32>
    tpu.vector_store %arg4[%c0_13, %c0_14, %c0_15], %25 {strides = array<i32>} : memref<1x16x128xf32, #tpu.memory_space<vmem>>, vector<1x16x32xf32>,
    %26 = vector.extract_strided_slice %20 {offsets = [1, 0, 0], sizes = [1, 16, 32], strides = [1, 1, 1]} : vector<4x16x32xf32> to vector<1x16x32xf32>
    %27 = vector.shape_cast %26 : vector<1x16x32xf32> to vector<16x32xf32>
    %c0_16 = arith.constant 0 : index
    %c0_17 = arith.constant 0 : index
    %c32 = arith.constant 32 : index
    %28 = vector.load %arg4[%c0_16, %c0_17, %c32] : memref<1x16x128xf32, #tpu.memory_space<vmem>>, vector<1x16x32xf32>
    %29 = vector.shape_cast %28 : vector<1x16x32xf32> to vector<16x32xf32>
    %30 = vector.shape_cast %27 : vector<16x32xf32> to vector<1x16x32xf32>
    tpu.vector_store %arg4[%c0_16, %c0_17, %c32], %30 {strides = array<i32>} : memref<1x16x128xf32, #tpu.memory_space<vmem>>, vector<1x16x32xf32>,
    %31 = vector.extract_strided_slice %20 {offsets = [2, 0, 0], sizes = [1, 16, 32], strides = [1, 1, 1]} : vector<4x16x32xf32> to vector<1x16x32xf32>
    %32 = vector.shape_cast %31 : vector<1x16x32xf32> to vector<16x32xf32>
    %c0_18 = arith.constant 0 : index
    %c0_19 = arith.constant 0 : index
    %c64 = arith.constant 64 : index
    %33 = vector.load %arg4[%c0_18, %c0_19, %c64] : memref<1x16x128xf32, #tpu.memory_space<vmem>>, vector<1x16x32xf32>
    %34 = vector.shape_cast %33 : vector<1x16x32xf32> to vector<16x32xf32>
    %35 = vector.shape_cast %32 : vector<16x32xf32> to vector<1x16x32xf32>
    tpu.vector_store %arg4[%c0_18, %c0_19, %c64], %35 {strides = array<i32>} : memref<1x16x128xf32, #tpu.memory_space<vmem>>, vector<1x16x32xf32>,
    %36 = vector.extract_strided_slice %20 {offsets = [3, 0, 0], sizes = [1, 16, 32], strides = [1, 1, 1]} : vector<4x16x32xf32> to vector<1x16x32xf32>
    %37 = vector.shape_cast %36 : vector<1x16x32xf32> to vector<16x32xf32>
    %c0_20 = arith.constant 0 : index
    %c0_21 = arith.constant 0 : index
    %c96 = arith.constant 96 : index
    %38 = vector.load %arg4[%c0_20, %c0_21, %c96] : memref<1x16x128xf32, #tpu.memory_space<vmem>>, vector<1x16x32xf32>
    %39 = vector.shape_cast %38 : vector<1x16x32xf32> to vector<16x32xf32>
    %40 = vector.shape_cast %37 : vector<16x32xf32> to vector<1x16x32xf32>
    tpu.vector_store %arg4[%c0_20, %c0_21, %c96], %40 {strides = array<i32>} : memref<1x16x128xf32, #tpu.memory_space<vmem>>, vector<1x16x32xf32>,
    return
  }
  func.func @transform_0(%arg0: i32) -> (i32, i32, i32) {
    %c0_i32 = arith.constant 0 : i32
    %c0_i32_0 = arith.constant 0 : i32
    %c0_i32_1 = arith.constant 0 : i32
    return %arg0, %c0_i32, %c0_i32_0 : i32, i32, i32
  }
  func.func @transform_1(%arg0: i32) -> (i32, i32, i32) {
    %c0_i32 = arith.constant 0 : i32
    %c0_i32_0 = arith.constant 0 : i32
    %c0_i32_1 = arith.constant 0 : i32
    return %arg0, %c0_i32, %c0_i32_0 : i32, i32, i32
  }
  func.func @transform_2(%arg0: i32) -> (i32, i32, i32) {
    %c0_i32 = arith.constant 0 : i32
    %c0_i32_0 = arith.constant 0 : i32
    %c0_i32_1 = arith.constant 0 : i32
    return %arg0, %c0_i32, %c0_i32_0 : i32, i32, i32
  }
  func.func @transform_3(%arg0: i32) -> (i32, i32, i32) {
    %c0_i32 = arith.constant 0 : i32
    %c0_i32_0 = arith.constant 0 : i32
    %c0_i32_1 = arith.constant 0 : i32
    return %arg0, %c0_i32, %c0_i32_0 : i32, i32, i32
  }
}

</mosaic_0001>

<llo_original>
// kernel: full_attention.1
$region0: #{full_attention.1}
  #allocation0 [shape = 'u32[]', space=smem, size = 0x4, offset = 0x4, fixed_abs, tag = 'smem constant byte address 0x4 - core index']
  #allocation1 [shape = 'u32[144,128]{1,0:T(1,128)}', space=vmem, size = 0x12000, scoped, tag = 'internal scratch']
  %s0 = inlined_call_operand.vmem [shape: f32[8,16,32], index: 0, kind: input, shape index: {}]
  %s1 = inlined_call_operand.vmem [shape: f32[8,16,32], index: 1, kind: input, shape index: {}]
  %s2 = inlined_call_operand.vmem [shape: f32[8,16,32], index: 2, kind: input, shape index: {}]
  %s3 = inlined_call_operand.vmem [shape: f32[2,16,128], index: 3, kind: output, shape index: {}]
  %s4 = sld [smem:[#allocation0]]
  $region45: #{full_attention.1} parent=0
    _
  %s6 = ssub.s32 1, %s4
  %s7 = scalar_select 0, %s6, %s4
  loop: start=0, step=1, limit=4
  $region2: #{full_attention.1} parent=0 // loop_pre_header
    _
  $region3: #{full_attention.1} parent=0 // loop_header
    %s9 = sphi 0, %s13
    %p10 = scmp.ge.s32.totalorder %s9, 4
    %s19 = sphi 0, %s21
    %s22 = sphi 0, %s19
    %s23 = sphi 0, %s22
    %s39 = sphi 0, %s23
    %s45 = sphi 0, %s47
    %s48 = sphi 0, %s45
    %s49 = sphi 0, %s48
    %s65 = sphi 0, %s49
    %s71 = sphi 0, %s73
    %s74 = sphi 0, %s71
    %s75 = sphi 0, %s74
    %s91 = sphi 0, %s75
    %s97 = sphi 0, %s99
    %s100 = sphi 0, %s97
    %s101 = sphi 0, %s100
    %s117 = sphi 0, %s101
  $region4: #{full_attention.1} parent=0 // loop_header_branch
    %12 = sbr.rel (%p10) target = $region8
  $region5: #{full_attention.1} parent=0 // loop_body
    %s14 = ssub.s32 %s9, 1
    %s15 = ssub.s32 %s9, 2
    %s16 = sadd.s32 %s9, 1
    %s17 = ssub.s32 %s9, %s16
    %p18 = scmp.eq.s32.totalorder %s17, 0
    %s20 = sadd.s32 %s19, 1
    %s21 = scalar_select %p18, %s19, %s20
    %p24 = pneg %p18
    %p25 = scmp.eq.s32.totalorder %s9, 1
    %p26 = por %p24, %p25
    %p27 = scmp.ne.s32.totalorder %s19, %s22
    %p28 = scmp.eq.s32.totalorder %s9, 0
    %p29 = por %p27, %p28
    %p30 = scmp.ne.s32.totalorder %s19, %s22
    %p31 = scmp.eq.s32.totalorder %s14, 1
    %p32 = por %p30, %p31
    %p33 = scmp.ne.s32.totalorder %s22, %s23
    %p34 = scmp.eq.s32.totalorder %s14, 0
    %p35 = por %p33, %p34
    %p36 = scmp.ne.s32.totalorder %s22, %s23
    %p37 = scmp.eq.s32.totalorder %s15, 1
    %p38 = por %p36, %p37
    %p40 = scmp.ne.s32.totalorder %s23, %s39
    %p41 = scmp.eq.s32.totalorder %s15, 0
    %p42 = por %p40, %p41
    %s43 = ssub.s32 %s9, %s16
    %p44 = scmp.eq.s32.totalorder %s43, 0
    %s46 = sadd.s32 %s45, 1
    %s47 = scalar_select %p44, %s45, %s46
    %p50 = pneg %p44
    %p51 = scmp.eq.s32.totalorder %s9, 1
    %p52 = por %p50, %p51
    %p53 = scmp.ne.s32.totalorder %s45, %s48
    %p54 = scmp.eq.s32.totalorder %s9, 0
    %p55 = por %p53, %p54
    %p56 = scmp.ne.s32.totalorder %s45, %s48
    %p57 = scmp.eq.s32.totalorder %s14, 1
    %p58 = por %p56, %p57
    %p59 = scmp.ne.s32.totalorder %s48, %s49
    %p60 = scmp.eq.s32.totalorder %s14, 0
    %p61 = por %p59, %p60
    %p62 = scmp.ne.s32.totalorder %s48, %s49
    %p63 = scmp.eq.s32.totalorder %s15, 1
    %p64 = por %p62, %p63
    %p66 = scmp.ne.s32.totalorder %s49, %s65
    %p67 = scmp.eq.s32.totalorder %s15, 0
    %p68 = por %p66, %p67
    %s69 = ssub.s32 %s9, %s16
    %p70 = scmp.eq.s32.totalorder %s69, 0
    %s72 = sadd.s32 %s71, 1
    %s73 = scalar_select %p70, %s71, %s72
    %p76 = pneg %p70
    %p77 = scmp.eq.s32.totalorder %s9, 1
    %p78 = por %p76, %p77
    %p79 = scmp.ne.s32.totalorder %s71, %s74
    %p80 = scmp.eq.s32.totalorder %s9, 0
    %p81 = por %p79, %p80
    %p82 = scmp.ne.s32.totalorder %s71, %s74
    %p83 = scmp.eq.s32.totalorder %s14, 1
    %p84 = por %p82, %p83
    %p85 = scmp.ne.s32.totalorder %s74, %s75
    %p86 = scmp.eq.s32.totalorder %s14, 0
    %p87 = por %p85, %p86
    %p88 = scmp.ne.s32.totalorder %s74, %s75
    %p89 = scmp.eq.s32.totalorder %s15, 1
    %p90 = por %p88, %p89
    %p92 = scmp.ne.s32.totalorder %s75, %s91
    %p93 = scmp.eq.s32.totalorder %s15, 0
    %p94 = por %p92, %p93
    %s95 = ssub.s32 %s9, %s16
    %p96 = scmp.eq.s32.totalorder %s95, 0
    %s98 = sadd.s32 %s97, 1
    %s99 = scalar_select %p96, %s97, %s98
    %p102 = pneg %p96
    %p103 = scmp.eq.s32.totalorder %s9, 1
    %p104 = por %p102, %p103
    %p105 = scmp.ne.s32.totalorder %s97, %s100
    %p106 = scmp.eq.s32.totalorder %s9, 0
    %p107 = por %p105, %p106
    %p108 = scmp.ne.s32.totalorder %s97, %s100
    %p109 = scmp.eq.s32.totalorder %s14, 1
    %p110 = por %p108, %p109
    %p111 = scmp.ne.s32.totalorder %s100, %s101
    %p112 = scmp.eq.s32.totalorder %s14, 0
    %p113 = por %p111, %p112
    %p114 = scmp.ne.s32.totalorder %s100, %s101
    %p115 = scmp.eq.s32.totalorder %s15, 1
    %p116 = por %p114, %p115
    %p118 = scmp.ne.s32.totalorder %s101, %s117
    %p119 = scmp.eq.s32.totalorder %s15, 0
    %p120 = por %p118, %p119
    %p121 = scmp.le.s32.totalorder 1, %s9
    %p122 = scmp.lt.s32.totalorder %s9, 3
    %p123 = pnand %p121, %p122
    %p124 = pneg %p123
    // Predicated region
    $region9: #{full_attention.1} parent=5 // pred_check
      _
    $region10: #{full_attention.1} parent=5 // pred_check_branch
      %126 = sbr.rel (%p123) target = $region12
    $region11: #{full_attention.1} parent=5 // pred_region
      %s127 = ssub.s32 %s9, 1
    $region12: #{full_attention.1} parent=5 // pred_fallthru
      _
    %p128 = scmp.lt.s32.totalorder %s9, 2
    // Predicated region
    $region13: #{full_attention.1} parent=5 // pred_check
      %p129 = pneg %p128
    $region14: #{full_attention.1} parent=5 // pred_check_branch
      %131 = sbr.rel (%p129) target = $region16
    $region15: #{full_attention.1} parent=5 // pred_region
      // Predicated region
      $region17: #{full_attention.1} parent=15 // pred_check
        %p132 = pneg %p29
      $region18: #{full_attention.1} parent=15 // pred_check_branch
        %134 = sbr.rel (%p132) target = $region20
      $region19: #{full_attention.1} parent=15 // pred_region
        %s135 = smul.u32 4, %s9
        %p136 = scmp.lt.s32.totalorder %s135, 7
        %s137 = scalar_select %p136, %s135, 7
        %s138 = smul.addr %s137, 2
        %s139 = smul.addr %s138, 8
        %s140 = scalar_lea.vmem %s0, %s139
        %s141 = smul.u32 4, %s9
      $region20: #{full_attention.1} parent=15 // pred_fallthru
        _
      // Predicated region
      $region21: #{full_attention.1} parent=15 // pred_check
        %p142 = pneg %p55
      $region22: #{full_attention.1} parent=15 // pred_check_branch
        %144 = sbr.rel (%p142) target = $region24
      $region23: #{full_attention.1} parent=15 // pred_region
        %s145 = smul.u32 4, %s9
        %p146 = scmp.lt.s32.totalorder %s145, 7
        %s147 = scalar_select %p146, %s145, 7
        %s148 = smul.addr %s147, 2
        %s149 = smul.addr %s148, 8
        %s150 = scalar_lea.vmem %s1, %s149
        %s151 = smul.u32 4, %s9
      $region24: #{full_attention.1} parent=15 // pred_fallthru
        _
      // Predicated region
      $region25: #{full_attention.1} parent=15 // pred_check
        %p152 = pneg %p81
      $region26: #{full_attention.1} parent=15 // pred_check_branch
        %154 = sbr.rel (%p152) target = $region28
      $region27: #{full_attention.1} parent=15 // pred_region
        %s155 = smul.u32 4, %s9
        %p156 = scmp.lt.s32.totalorder %s155, 7
        %s157 = scalar_select %p156, %s155, 7
        %s158 = smul.addr %s157, 2
        %s159 = smul.addr %s158, 8
        %s160 = scalar_lea.vmem %s2, %s159
        %s161 = smul.u32 4, %s9
      $region28: #{full_attention.1} parent=15 // pred_fallthru
        _
    $region16: #{full_attention.1} parent=5 // pred_fallthru
      _
    %p162 = scmp.le.s32.totalorder 1, %s9
    %p163 = scmp.lt.s32.totalorder %s9, 3
    %p164 = pnand %p162, %p163
    %p165 = pneg %p164
    // Predicated region
    $region29: #{full_attention.1} parent=5 // pred_check
      _
    $region30: #{full_attention.1} parent=5 // pred_check_branch
      %167 = sbr.rel (%p164) target = $region32
    $region31: #{full_attention.1} parent=5 // pred_region
      %s168 = ssub.s32 %s9, 1
      %s169 = smul.u32 4, %s14
      %p170 = scmp.lt.s32.totalorder %s169, 7
      %s171 = scalar_select %p170, %s169, 7
      %s172 = smul.addr %s171, 2
      %s173 = smul.addr %s172, 8
      %s174 = scalar_lea.vmem %s0, %s173
      %p175 = pneg %p35
      %p176 = pneg %p32
      %s177 = smul.u32 4, %s14
      %p178 = scmp.lt.s32.totalorder %s177, 7
      %s179 = scalar_select %p178, %s177, 7
      %s180 = smul.addr %s179, 2
      %s181 = smul.addr %s180, 8
      %s182 = scalar_lea.vmem %s1, %s181
      %p183 = pneg %p61
      %p184 = pneg %p58
      %s185 = smul.u32 4, %s14
      %p186 = scmp.lt.s32.totalorder %s185, 7
      %s187 = scalar_select %p186, %s185, 7
      %s188 = smul.addr %s187, 2
      %s189 = smul.addr %s188, 8
      %s190 = scalar_lea.vmem %s2, %s189
      %p191 = pneg %p87
      %p192 = pneg %p84
      %p193 = pneg %p113
      %p194 = pneg %p110
      %p195 = scmp.lt.s32.totalorder %s14, 1
      %s196 = scalar_select %p195, %s14, 1
      %s197 = smul.addr %s196, 2
      %s198 = smul.addr %s197, 8
      %s199 = scalar_lea.vmem %s3, %s198
      %s200 = smul.u32 4, %s14
      %p201 = scmp.lt.s32.totalorder %s200, 7
      %s202 = scalar_select %p201, %s200, 7
      %s203 = smul.addr %s202, 2
      %s204 = smul.addr %s203, 8
      %s205 = scalar_lea.vmem %s0, %s204
      %s206 = smul.u32 4, %s14
      %s207 = smul.u32 4, %s14
      %p208 = scmp.lt.s32.totalorder %s207, 7
      %s209 = scalar_select %p208, %s207, 7
      %s210 = smul.addr %s209, 2
      %s211 = smul.addr %s210, 8
      %s212 = scalar_lea.vmem %s1, %s211
      %s213 = smul.u32 4, %s14
      %s214 = smul.u32 4, %s14
      %p215 = scmp.lt.s32.totalorder %s214, 7
      %s216 = scalar_select %p215, %s214, 7
      %s217 = smul.addr %s216, 2
      %s218 = smul.addr %s217, 8
      %s219 = scalar_lea.vmem %s2, %s218
      %s220 = smul.u32 4, %s14
      %p221 = scmp.lt.s32.totalorder %s14, 1
      %s222 = scalar_select %p221, %s14, 1
      %s223 = smul.addr %s222, 2
      %s224 = smul.addr %s223, 8
      %s225 = scalar_lea.vmem %s3, %s224
      %v226 = vld [vmem:[%s205] sm:$0xff]
      %v227 = vld [vmem:[%s205 + $0x8] sm:$0xff]
      %v228 = vld [vmem:[%s205 + $0x10] sm:$0xff]
      %v229 = vld [vmem:[%s205 + $0x18] sm:$0xff]
      %v230 = vld [vmem:[%s205 + $0x20] sm:$0xff]
      %v231 = vld [vmem:[%s205 + $0x28] sm:$0xff]
      %v232 = vld [vmem:[%s205 + $0x30] sm:$0xff]
      %v233 = vld [vmem:[%s205 + $0x38] sm:$0xff]
      %v234 = vld [vmem:[%s212] sm:$0xff]
      %v235 = vld [vmem:[%s212 + $0x8] sm:$0xff]
      %v236 = vld [vmem:[%s212 + $0x10] sm:$0xff]
      %v237 = vld [vmem:[%s212 + $0x18] sm:$0xff]
      %v238 = vld [vmem:[%s212 + $0x20] sm:$0xff]
      %v239 = vld [vmem:[%s212 + $0x28] sm:$0xff]
      %v240 = vld [vmem:[%s212 + $0x30] sm:$0xff]
      %v241 = vld [vmem:[%s212 + $0x38] sm:$0xff]
      %v242 = vld [vmem:[%s219] sm:$0xff]
      %v243 = vld [vmem:[%s219 + $0x8] sm:$0xff]
      %v244 = vld [vmem:[%s219 + $0x10] sm:$0xff]
      %v245 = vld [vmem:[%s219 + $0x18] sm:$0xff]
      %v246 = vld [vmem:[%s219 + $0x20] sm:$0xff]
      %v247 = vld [vmem:[%s219 + $0x28] sm:$0xff]
      %v248 = vld [vmem:[%s219 + $0x30] sm:$0xff]
      %v249 = vld [vmem:[%s219 + $0x38] sm:$0xff]
      %vm250 = vcmask 261120
      %v252 = vsel %vm250, %v226, 0
      %v255 = vsel %vm250, %v227, 0
      %v258 = vsel %vm250, %v234, 0
      %v261 = vsel %vm250, %v235, 0
      %263 = vmatprep.subr.mxu0 0.0
      %264 = vmatpush1.xpose.msra.mxu0 0.0
      %265 = vmatprep.subr.mxu0 0.0
      %266 = vmatpush1.xpose.msra.mxu0 0.0
      %267 = vmatprep.subr.mxu0 0.0
      %268 = vmatpush1.xpose.msra.mxu0 0.0
      %269 = vmatprep.subr.mxu0 0.0
      %270 = vmatpush1.xpose.msra.mxu0 0.0
      %271 = vmatprep.subr.mxu0 0.0
      %272 = vmatpush1.xpose.msra.mxu0 0.0
      %273 = vmatprep.subr.mxu0 0.0
      %274 = vmatpush1.xpose.msra.mxu0 0.0
      %275 = vmatprep.subr.mxu0 0.0
      %276 = vmatpush1.xpose.msra.mxu0 0.0
      %277 = vmatprep.subr.mxu0 0.0
      %278 = vmatpush1.xpose.msra.mxu0 0.0
      %279 = vmatprep.subr.mxu0 0.0
      %280 = vmatpush1.xpose.msra.mxu0 0.0
      %281 = vmatprep.subr.mxu0 0.0
      %282 = vmatpush1.xpose.msra.mxu0 0.0
      %283 = vmatprep.subr.mxu0 0.0
      %284 = vmatpush1.xpose.msra.mxu0 0.0
      %285 = vmatprep.subr.mxu0 0.0
      %286 = vmatpush1.xpose.msra.mxu0 0.0
      %287 = vmatprep.subr.mxu0 0.0
      %288 = vmatpush1.xpose.msra.mxu0 0.0
      %289 = vmatprep.subr.mxu0 0.0
      %290 = vmatpush1.xpose.msra.mxu0 0.0
      %291 = vmatprep.subr.mxu0 0.0
      %292 = vmatpush1.xpose.msra.mxu0 %v261
      %293 = vmatprep.subr.mxu0 0.0
      %294 = vmatpush1.xpose.msra.mxu0 %v258
      %295 = vmatprep.subr.mxu0 0.0
      %296 = vmatpush2.xpose.msra.mxu0 0.0
      %297 = vmatprep.subr.mxu0 0.0
      %298 = vmatpush2.xpose.msra.mxu0 0.0
      %299 = vmatprep.subr.mxu0 0.0
      %300 = vmatpush2.xpose.msra.mxu0 0.0
      %301 = vmatprep.subr.mxu0 0.0
      %302 = vmatpush2.xpose.msra.mxu0 0.0
      %303 = vmatprep.subr.mxu0 0.0
      %304 = vmatpush2.xpose.msra.mxu0 0.0
      %305 = vmatprep.subr.mxu0 0.0
      %306 = vmatpush2.xpose.msra.mxu0 0.0
      %307 = vmatprep.subr.mxu0 0.0
      %308 = vmatpush2.xpose.msra.mxu0 0.0
      %309 = vmatprep.subr.mxu0 0.0
      %310 = vmatpush2.xpose.msra.mxu0 0.0
      %311 = vmatprep.subr.mxu0 0.0
      %312 = vmatpush2.xpose.msra.mxu0 0.0
      %313 = vmatprep.subr.mxu0 0.0
      %314 = vmatpush2.xpose.msra.mxu0 0.0
      %315 = vmatprep.subr.mxu0 0.0
      %316 = vmatpush2.xpose.msra.mxu0 0.0
      %317 = vmatprep.subr.mxu0 0.0
      %318 = vmatpush2.xpose.msra.mxu0 0.0
      %319 = vmatprep.subr.mxu0 0.0
      %320 = vmatpush2.xpose.msra.mxu0 0.0
      %321 = vmatprep.subr.mxu0 0.0
      %322 = vmatpush2.xpose.msra.mxu0 0.0
      %323 = vmatprep.subr.mxu0 0.0
      %324 = vmatpush2.xpose.msra.mxu0 0.0
      %325 = vmatprep.subr.mxu0 0.0
      %326 = vmatpush2.xpose.msra.mxu0 0.0
      %327 = vmatprep.mubr.f32.mxu0 0.0
      %328 = vmatmul.mubr.f32.gmra.mxu0 %v252
      %v329 = vpop.f32.mrf.mxu0
      %v330 = vadd.f32 0.0, %v329
      %v331 = vpop.f32.mrf.mxu0
      %332 = vmatprep.mubr.f32.mxu0 0.0
      %333 = vmatmul.mubr.f32.gmra.mxu0 %v255
      %v334 = vpop.f32.mrf.mxu0
      %v335 = vadd.f32 0.0, %v334
      %v336 = vpop.f32.mrf.mxu0
      %337 = vdwg.mxu0
      %v339 = vsel %vm250, %v228, 0
      %v342 = vsel %vm250, %v229, 0
      %v345 = vsel %vm250, %v236, 0
      %v348 = vsel %vm250, %v237, 0
      %350 = vmatprep.subr.mxu0 0.0
      %351 = vmatpush1.xpose.msra.mxu0 0.0
      %352 = vmatprep.subr.mxu0 0.0
      %353 = vmatpush1.xpose.msra.mxu0 0.0
      %354 = vmatprep.subr.mxu0 0.0
      %355 = vmatpush1.xpose.msra.mxu0 0.0
      %356 = vmatprep.subr.mxu0 0.0
      %357 = vmatpush1.xpose.msra.mxu0 0.0
      %358 = vmatprep.subr.mxu0 0.0
      %359 = vmatpush1.xpose.msra.mxu0 0.0
      %360 = vmatprep.subr.mxu0 0.0
      %361 = vmatpush1.xpose.msra.mxu0 0.0
      %362 = vmatprep.subr.mxu0 0.0
      %363 = vmatpush1.xpose.msra.mxu0 0.0
      %364 = vmatprep.subr.mxu0 0.0
      %365 = vmatpush1.xpose.msra.mxu0 0.0
      %366 = vmatprep.subr.mxu0 0.0
      %367 = vmatpush1.xpose.msra.mxu0 0.0
      %368 = vmatprep.subr.mxu0 0.0
      %369 = vmatpush1.xpose.msra.mxu0 0.0
      %370 = vmatprep.subr.mxu0 0.0
      %371 = vmatpush1.xpose.msra.mxu0 0.0
      %372 = vmatprep.subr.mxu0 0.0
      %373 = vmatpush1.xpose.msra.mxu0 0.0
      %374 = vmatprep.subr.mxu0 0.0
      %375 = vmatpush1.xpose.msra.mxu0 0.0
      %376 = vmatprep.subr.mxu0 0.0
      %377 = vmatpush1.xpose.msra.mxu0 0.0
      %378 = vmatprep.subr.mxu0 0.0
      %379 = vmatpush1.xpose.msra.mxu0 %v348
      %380 = vmatprep.subr.mxu0 0.0
      %381 = vmatpush1.xpose.msra.mxu0 %v345
      %382 = vmatprep.subr.mxu0 0.0
      %383 = vmatpush2.xpose.msra.mxu0 0.0
      %384 = vmatprep.subr.mxu0 0.0
      %385 = vmatpush2.xpose.msra.mxu0 0.0
      %386 = vmatprep.subr.mxu0 0.0
      %387 = vmatpush2.xpose.msra.mxu0 0.0
      %388 = vmatprep.subr.mxu0 0.0
      %389 = vmatpush2.xpose.msra.mxu0 0.0
      %390 = vmatprep.subr.mxu0 0.0
      %391 = vmatpush2.xpose.msra.mxu0 0.0
      %392 = vmatprep.subr.mxu0 0.0
      %393 = vmatpush2.xpose.msra.mxu0 0.0
      %394 = vmatprep.subr.mxu0 0.0
      %395 = vmatpush2.xpose.msra.mxu0 0.0
      %396 = vmatprep.subr.mxu0 0.0
      %397 = vmatpush2.xpose.msra.mxu0 0.0
      %398 = vmatprep.subr.mxu0 0.0
      %399 = vmatpush2.xpose.msra.mxu0 0.0
      %400 = vmatprep.subr.mxu0 0.0
      %401 = vmatpush2.xpose.msra.mxu0 0.0
      %402 = vmatprep.subr.mxu0 0.0
      %403 = vmatpush2.xpose.msra.mxu0 0.0
      %404 = vmatprep.subr.mxu0 0.0
      %405 = vmatpush2.xpose.msra.mxu0 0.0
      %406 = vmatprep.subr.mxu0 0.0
      %407 = vmatpush2.xpose.msra.mxu0 0.0
      %408 = vmatprep.subr.mxu0 0.0
      %409 = vmatpush2.xpose.msra.mxu0 0.0
      %410 = vmatprep.subr.mxu0 0.0
      %411 = vmatpush2.xpose.msra.mxu0 0.0
      %412 = vmatprep.subr.mxu0 0.0
      %413 = vmatpush2.xpose.msra.mxu0 0.0
      %414 = vmatprep.mubr.f32.mxu0 0.0
      %415 = vmatmul.mubr.f32.gmra.mxu0 %v339
      %v416 = vpop.f32.mrf.mxu0
      %v417 = vadd.f32 0.0, %v416
      %v418 = vpop.f32.mrf.mxu0
      %419 = vmatprep.mubr.f32.mxu0 0.0
      %420 = vmatmul.mubr.f32.gmra.mxu0 %v342
      %v421 = vpop.f32.mrf.mxu0
      %v422 = vadd.f32 0.0, %v421
      %v423 = vpop.f32.mrf.mxu0
      %424 = vdwg.mxu0
      %v426 = vsel %vm250, %v230, 0
      %v429 = vsel %vm250, %v231, 0
      %v432 = vsel %vm250, %v238, 0
      %v435 = vsel %vm250, %v239, 0
      %437 = vmatprep.subr.mxu0 0.0
      %438 = vmatpush1.xpose.msra.mxu0 0.0
      %439 = vmatprep.subr.mxu0 0.0
      %440 = vmatpush1.xpose.msra.mxu0 0.0
      %441 = vmatprep.subr.mxu0 0.0
      %442 = vmatpush1.xpose.msra.mxu0 0.0
      %443 = vmatprep.subr.mxu0 0.0
      %444 = vmatpush1.xpose.msra.mxu0 0.0
      %445 = vmatprep.subr.mxu0 0.0
      %446 = vmatpush1.xpose.msra.mxu0 0.0
      %447 = vmatprep.subr.mxu0 0.0
      %448 = vmatpush1.xpose.msra.mxu0 0.0
      %449 = vmatprep.subr.mxu0 0.0
      %450 = vmatpush1.xpose.msra.mxu0 0.0
      %451 = vmatprep.subr.mxu0 0.0
      %452 = vmatpush1.xpose.msra.mxu0 0.0
      %453 = vmatprep.subr.mxu0 0.0
      %454 = vmatpush1.xpose.msra.mxu0 0.0
      %455 = vmatprep.subr.mxu0 0.0
      %456 = vmatpush1.xpose.msra.mxu0 0.0
      %457 = vmatprep.subr.mxu0 0.0
      %458 = vmatpush1.xpose.msra.mxu0 0.0
      %459 = vmatprep.subr.mxu0 0.0
      %460 = vmatpush1.xpose.msra.mxu0 0.0
      %461 = vmatprep.subr.mxu0 0.0
      %462 = vmatpush1.xpose.msra.mxu0 0.0
      %463 = vmatprep.subr.mxu0 0.0
      %464 = vmatpush1.xpose.msra.mxu0 0.0
      %465 = vmatprep.subr.mxu0 0.0
      %466 = vmatpush1.xpose.msra.mxu0 %v435
      %467 = vmatprep.subr.mxu0 0.0
      %468 = vmatpush1.xpose.msra.mxu0 %v432
      %469 = vmatprep.subr.mxu0 0.0
      %470 = vmatpush2.xpose.msra.mxu0 0.0
      %471 = vmatprep.subr.mxu0 0.0
      %472 = vmatpush2.xpose.msra.mxu0 0.0
      %473 = vmatprep.subr.mxu0 0.0
      %474 = vmatpush2.xpose.msra.mxu0 0.0
      %475 = vmatprep.subr.mxu0 0.0
      %476 = vmatpush2.xpose.msra.mxu0 0.0
      %477 = vmatprep.subr.mxu0 0.0
      %478 = vmatpush2.xpose.msra.mxu0 0.0
      %479 = vmatprep.subr.mxu0 0.0
      %480 = vmatpush2.xpose.msra.mxu0 0.0
      %481 = vmatprep.subr.mxu0 0.0
      %482 = vmatpush2.xpose.msra.mxu0 0.0
      %483 = vmatprep.subr.mxu0 0.0
      %484 = vmatpush2.xpose.msra.mxu0 0.0
      %485 = vmatprep.subr.mxu0 0.0
      %486 = vmatpush2.xpose.msra.mxu0 0.0
      %487 = vmatprep.subr.mxu0 0.0
      %488 = vmatpush2.xpose.msra.mxu0 0.0
      %489 = vmatprep.subr.mxu0 0.0
      %490 = vmatpush2.xpose.msra.mxu0 0.0
      %491 = vmatprep.subr.mxu0 0.0
      %492 = vmatpush2.xpose.msra.mxu0 0.0
      %493 = vmatprep.subr.mxu0 0.0
      %494 = vmatpush2.xpose.msra.mxu0 0.0
      %495 = vmatprep.subr.mxu0 0.0
      %496 = vmatpush2.xpose.msra.mxu0 0.0
      %497 = vmatprep.subr.mxu0 0.0
      %498 = vmatpush2.xpose.msra.mxu0 0.0
      %499 = vmatprep.subr.mxu0 0.0
      %500 = vmatpush2.xpose.msra.mxu0 0.0
      %501 = vmatprep.mubr.f32.mxu0 0.0
      %502 = vmatmul.mubr.f32.gmra.mxu0 %v426
      %v503 = vpop.f32.mrf.mxu0
      %v504 = vadd.f32 0.0, %v503
      %v505 = vpop.f32.mrf.mxu0
      %506 = vmatprep.mubr.f32.mxu0 0.0
      %507 = vmatmul.mubr.f32.gmra.mxu0 %v429
      %v508 = vpop.f32.mrf.mxu0
      %v509 = vadd.f32 0.0, %v508
      %v510 = vpop.f32.mrf.mxu0
      %511 = vdwg.mxu0
      %v513 = vsel %vm250, %v232, 0
      %v516 = vsel %vm250, %v233, 0
      %v519 = vsel %vm250, %v240, 0
      %v522 = vsel %vm250, %v241, 0
      %524 = vmatprep.subr.mxu0 0.0
      %525 = vmatpush1.xpose.msra.mxu0 0.0
      %526 = vmatprep.subr.mxu0 0.0
      %527 = vmatpush1.xpose.msra.mxu0 0.0
      %528 = vmatprep.subr.mxu0 0.0
      %529 = vmatpush1.xpose.msra.mxu0 0.0
      %530 = vmatprep.subr.mxu0 0.0
      %531 = vmatpush1.xpose.msra.mxu0 0.0
      %532 = vmatprep.subr.mxu0 0.0
      %533 = vmatpush1.xpose.msra.mxu0 0.0
      %534 = vmatprep.subr.mxu0 0.0
      %535 = vmatpush1.xpose.msra.mxu0 0.0
      %536 = vmatprep.subr.mxu0 0.0
      %537 = vmatpush1.xpose.msra.mxu0 0.0
      %538 = vmatprep.subr.mxu0 0.0
      %539 = vmatpush1.xpose.msra.mxu0 0.0
      %540 = vmatprep.subr.mxu0 0.0
      %541 = vmatpush1.xpose.msra.mxu0 0.0
      %542 = vmatprep.subr.mxu0 0.0
      %543 = vmatpush1.xpose.msra.mxu0 0.0
      %544 = vmatprep.subr.mxu0 0.0
      %545 = vmatpush1.xpose.msra.mxu0 0.0
      %546 = vmatprep.subr.mxu0 0.0
      %547 = vmatpush1.xpose.msra.mxu0 0.0
      %548 = vmatprep.subr.mxu0 0.0
      %549 = vmatpush1.xpose.msra.mxu0 0.0
      %550 = vmatprep.subr.mxu0 0.0
      %551 = vmatpush1.xpose.msra.mxu0 0.0
      %552 = vmatprep.subr.mxu0 0.0
      %553 = vmatpush1.xpose.msra.mxu0 %v522
      %554 = vmatprep.subr.mxu0 0.0
      %555 = vmatpush1.xpose.msra.mxu0 %v519
      %556 = vmatprep.subr.mxu0 0.0
      %557 = vmatpush2.xpose.msra.mxu0 0.0
      %558 = vmatprep.subr.mxu0 0.0
      %559 = vmatpush2.xpose.msra.mxu0 0.0
      %560 = vmatprep.subr.mxu0 0.0
      %561 = vmatpush2.xpose.msra.mxu0 0.0
      %562 = vmatprep.subr.mxu0 0.0
      %563 = vmatpush2.xpose.msra.mxu0 0.0
      %564 = vmatprep.subr.mxu0 0.0
      %565 = vmatpush2.xpose.msra.mxu0 0.0
      %566 = vmatprep.subr.mxu0 0.0
      %567 = vmatpush2.xpose.msra.mxu0 0.0
      %568 = vmatprep.subr.mxu0 0.0
      %569 = vmatpush2.xpose.msra.mxu0 0.0
      %570 = vmatprep.subr.mxu0 0.0
      %571 = vmatpush2.xpose.msra.mxu0 0.0
      %572 = vmatprep.subr.mxu0 0.0
      %573 = vmatpush2.xpose.msra.mxu0 0.0
      %574 = vmatprep.subr.mxu0 0.0
      %575 = vmatpush2.xpose.msra.mxu0 0.0
      %576 = vmatprep.subr.mxu0 0.0
      %577 = vmatpush2.xpose.msra.mxu0 0.0
      %578 = vmatprep.subr.mxu0 0.0
      %579 = vmatpush2.xpose.msra.mxu0 0.0
      %580 = vmatprep.subr.mxu0 0.0
      %581 = vmatpush2.xpose.msra.mxu0 0.0
      %582 = vmatprep.subr.mxu0 0.0
      %583 = vmatpush2.xpose.msra.mxu0 0.0
      %584 = vmatprep.subr.mxu0 0.0
      %585 = vmatpush2.xpose.msra.mxu0 0.0
      %586 = vmatprep.subr.mxu0 0.0
      %587 = vmatpush2.xpose.msra.mxu0 0.0
      %588 = vmatprep.mubr.f32.mxu0 0.0
      %589 = vmatmul.mubr.f32.gmra.mxu0 %v513
      %v590 = vpop.f32.mrf.mxu0
      %v591 = vadd.f32 0.0, %v590
      %v592 = vpop.f32.mrf.mxu0
      %593 = vmatprep.mubr.f32.mxu0 0.0
      %594 = vmatmul.mubr.f32.gmra.mxu0 %v516
      %v595 = vpop.f32.mrf.mxu0
      %v596 = vadd.f32 0.0, %v595
      %v597 = vpop.f32.mrf.mxu0
      %598 = vdwg.mxu0
      %v599 = vmul.f32 %v330, 0.17677669
      %v600 = vmul.f32 %v335, 0.17677669
      %v601 = vmul.f32 %v417, 0.17677669
      %v602 = vmul.f32 %v422, 0.17677669
      %v603 = vmul.f32 %v504, 0.17677669
      %v604 = vmul.f32 %v509, 0.17677669
      %v605 = vmul.f32 %v591, 0.17677669
      %v606 = vmul.f32 %v596, 0.17677669
      %v607 = vlaneseq
      %v608 = vshrl.u32 %v607, 7
      %v609 = vadd.s32 %v608, 8
      %v610 = vlaneseq
      %v611 = vand.u32 %v610, 127
      %vm612 = vcmp.gt.s32.totalorder %v611, %v608
      %vm613 = vcmp.gt.s32.totalorder %v611, %v609
      %v614 = vsel %vm612, -inf, %v599
      %v615 = vsel %vm613, -inf, %v600
      %v616 = vsel %vm612, -inf, %v601
      %v617 = vsel %vm613, -inf, %v602
      %v618 = vsel %vm612, -inf, %v603
      %v619 = vsel %vm613, -inf, %v604
      %v620 = vsel %vm612, -inf, %v605
      %v621 = vsel %vm613, -inf, %v606
      %vm622 = vcmask 130048
      %v623 = vsel %vm622, %v614, -inf
      %624 = vmax.xlane.f32.xlu0 %v623
      %v625 = vpop.xlane.xlu0 %624
      %v626 = vsel %vm622, %v615, -inf
      %627 = vmax.xlane.f32.xlu0 %v626
      %v628 = vpop.xlane.xlu0 %627
      %v629 = vsel %vm622, %v616, -inf
      %630 = vmax.xlane.f32.xlu0 %v629
      %v631 = vpop.xlane.xlu0 %630
      %v632 = vsel %vm622, %v617, -inf
      %633 = vmax.xlane.f32.xlu0 %v632
      %v634 = vpop.xlane.xlu0 %633
      %v635 = vsel %vm622, %v618, -inf
      %636 = vmax.xlane.f32.xlu0 %v635
      %v637 = vpop.xlane.xlu0 %636
      %v638 = vsel %vm622, %v619, -inf
      %639 = vmax.xlane.f32.xlu0 %v638
      %v640 = vpop.xlane.xlu0 %639
      %v641 = vsel %vm622, %v620, -inf
      %642 = vmax.xlane.f32.xlu0 %v641
      %v643 = vpop.xlane.xlu0 %642
      %v644 = vsel %vm622, %v621, -inf
      %645 = vmax.xlane.f32.xlu0 %v644
      %v646 = vpop.xlane.xlu0 %645
      %v647 = vsub.f32 %v614, %v625
      %v648 = vsub.f32 %v615, %v628
      %v649 = vsub.f32 %v616, %v631
      %v650 = vsub.f32 %v617, %v634
      %v651 = vsub.f32 %v618, %v637
      %v652 = vsub.f32 %v619, %v640
      %v653 = vsub.f32 %v620, %v643
      %v654 = vsub.f32 %v621, %v646
      %v655 = vmul.f32 %v647, 1.442695
      %v656 = vpow.pop %v655
      %v657 = vmul.f32 %v648, 1.442695
      %v658 = vpow.pop %v657
      %v659 = vmul.f32 %v649, 1.442695
      %v660 = vpow.pop %v659
      %v661 = vmul.f32 %v650, 1.442695
      %v662 = vpow.pop %v661
      %v663 = vmul.f32 %v651, 1.442695
      %v664 = vpow.pop %v663
      %v665 = vmul.f32 %v652, 1.442695
      %v666 = vpow.pop %v665
      %v667 = vmul.f32 %v653, 1.442695
      %v668 = vpow.pop %v667
      %v669 = vmul.f32 %v654, 1.442695
      %v670 = vpow.pop %v669
      %v671 = vsel %vm622, %v656, 0.0
      %672 = vadd.xlane.f32.xlu0 %v671
      %v673 = vpop.xlane.xlu0 %672
      %v674 = vsel %vm622, %v658, 0.0
      %675 = vadd.xlane.f32.xlu0 %v674
      %v676 = vpop.xlane.xlu0 %675
      %v677 = vsel %vm622, %v660, 0.0
      %678 = vadd.xlane.f32.xlu0 %v677
      %v679 = vpop.xlane.xlu0 %678
      %v680 = vsel %vm622, %v662, 0.0
      %681 = vadd.xlane.f32.xlu0 %v680
      %v682 = vpop.xlane.xlu0 %681
      %v683 = vsel %vm622, %v664, 0.0
      %684 = vadd.xlane.f32.xlu0 %v683
      %v685 = vpop.xlane.xlu0 %684
      %v686 = vsel %vm622, %v666, 0.0
      %687 = vadd.xlane.f32.xlu0 %v686
      %v688 = vpop.xlane.xlu0 %687
      %v689 = vsel %vm622, %v668, 0.0
      %690 = vadd.xlane.f32.xlu0 %v689
      %v691 = vpop.xlane.xlu0 %690
      %v692 = vsel %vm622, %v670, 0.0
      %693 = vadd.xlane.f32.xlu0 %v692
      %v694 = vpop.xlane.xlu0 %693
      %v695 = vrcp.pop %v673
      %v696 = vmul.f32 %v656, %v695
      %v697 = vrcp.pop %v676
      %v698 = vmul.f32 %v658, %v697
      %v699 = vrcp.pop %v679
      %v700 = vmul.f32 %v660, %v699
      %v701 = vrcp.pop %v682
      %v702 = vmul.f32 %v662, %v701
      %v703 = vrcp.pop %v685
      %v704 = vmul.f32 %v664, %v703
      %v705 = vrcp.pop %v688
      %v706 = vmul.f32 %v666, %v705
      %v707 = vrcp.pop %v691
      %v708 = vmul.f32 %v668, %v707
      %v709 = vrcp.pop %v694
      %v710 = vmul.f32 %v670, %v709
      %v712 = vsel %vm622, %v696, 0
      %v715 = vsel %vm622, %v698, 0
      %717 = vmatprep.subr.mxu0 0.0
      %718 = vmatpush1.msra.mxu0 0.0
      %719 = vmatprep.subr.mxu0 0.0
      %720 = vmatpush1.msra.mxu0 0.0
      %721 = vmatprep.subr.mxu0 0.0
      %722 = vmatpush1.msra.mxu0 0.0
      %723 = vmatprep.subr.mxu0 0.0
      %724 = vmatpush1.msra.mxu0 0.0
      %725 = vmatprep.subr.mxu0 0.0
      %726 = vmatpush1.msra.mxu0 0.0
      %727 = vmatprep.subr.mxu0 0.0
      %728 = vmatpush1.msra.mxu0 0.0
      %729 = vmatprep.subr.mxu0 0.0
      %730 = vmatpush1.msra.mxu0 0.0
      %731 = vmatprep.subr.mxu0 0.0
      %732 = vmatpush1.msra.mxu0 0.0
      %733 = vmatprep.subr.mxu0 0.0
      %734 = vmatpush1.msra.mxu0 0.0
      %735 = vmatprep.subr.mxu0 0.0
      %736 = vmatpush1.msra.mxu0 0.0
      %737 = vmatprep.subr.mxu0 0.0
      %738 = vmatpush1.msra.mxu0 0.0
      %739 = vmatprep.subr.mxu0 0.0
      %740 = vmatpush1.msra.mxu0 0.0
      %741 = vmatprep.subr.mxu0 0.0
      %742 = vmatpush1.msra.mxu0 0.0
      %743 = vmatprep.subr.mxu0 0.0
      %744 = vmatpush1.msra.mxu0 0.0
      %745 = vmatprep.subr.mxu0 0.0
      %746 = vmatpush1.msra.mxu0 %v243
      %747 = vmatprep.subr.mxu0 0.0
      %748 = vmatpush1.msra.mxu0 %v242
      %749 = vmatprep.subr.mxu0 0.0
      %750 = vmatpush2.msra.mxu0 0.0
      %751 = vmatprep.subr.mxu0 0.0
      %752 = vmatpush2.msra.mxu0 0.0
      %753 = vmatprep.subr.mxu0 0.0
      %754 = vmatpush2.msra.mxu0 0.0
      %755 = vmatprep.subr.mxu0 0.0
      %756 = vmatpush2.msra.mxu0 0.0
      %757 = vmatprep.subr.mxu0 0.0
      %758 = vmatpush2.msra.mxu0 0.0
      %759 = vmatprep.subr.mxu0 0.0
      %760 = vmatpush2.msra.mxu0 0.0
      %761 = vmatprep.subr.mxu0 0.0
      %762 = vmatpush2.msra.mxu0 0.0
      %763 = vmatprep.subr.mxu0 0.0
      %764 = vmatpush2.msra.mxu0 0.0
      %765 = vmatprep.subr.mxu0 0.0
      %766 = vmatpush2.msra.mxu0 0.0
      %767 = vmatprep.subr.mxu0 0.0
      %768 = vmatpush2.msra.mxu0 0.0
      %769 = vmatprep.subr.mxu0 0.0
      %770 = vmatpush2.msra.mxu0 0.0
      %771 = vmatprep.subr.mxu0 0.0
      %772 = vmatpush2.msra.mxu0 0.0
      %773 = vmatprep.subr.mxu0 0.0
      %774 = vmatpush2.msra.mxu0 0.0
      %775 = vmatprep.subr.mxu0 0.0
      %776 = vmatpush2.msra.mxu0 0.0
      %777 = vmatprep.subr.mxu0 0.0
      %778 = vmatpush2.msra.mxu0 0.0
      %779 = vmatprep.subr.mxu0 0.0
      %780 = vmatpush2.msra.mxu0 0.0
      %781 = vmatprep.mubr.f32.mxu0 0.0
      %782 = vmatmul.mubr.f32.gmra.mxu0 %v712
      %v783 = vpop.f32.mrf.mxu0
      %v784 = vadd.f32 0.0, %v783
      %v785 = vpop.f32.mrf.mxu0
      %786 = vmatprep.mubr.f32.mxu0 0.0
      %787 = vmatmul.mubr.f32.gmra.mxu0 %v715
      %v788 = vpop.f32.mrf.mxu0
      %v789 = vadd.f32 0.0, %v788
      %v790 = vpop.f32.mrf.mxu0
      %791 = vdwg.mxu0
      %v793 = vsel %vm622, %v700, 0
      %v796 = vsel %vm622, %v702, 0
      %798 = vmatprep.subr.mxu0 0.0
      %799 = vmatpush1.msra.mxu0 0.0
      %800 = vmatprep.subr.mxu0 0.0
      %801 = vmatpush1.msra.mxu0 0.0
      %802 = vmatprep.subr.mxu0 0.0
      %803 = vmatpush1.msra.mxu0 0.0
      %804 = vmatprep.subr.mxu0 0.0
      %805 = vmatpush1.msra.mxu0 0.0
      %806 = vmatprep.subr.mxu0 0.0
      %807 = vmatpush1.msra.mxu0 0.0
      %808 = vmatprep.subr.mxu0 0.0
      %809 = vmatpush1.msra.mxu0 0.0
      %810 = vmatprep.subr.mxu0 0.0
      %811 = vmatpush1.msra.mxu0 0.0
      %812 = vmatprep.subr.mxu0 0.0
      %813 = vmatpush1.msra.mxu0 0.0
      %814 = vmatprep.subr.mxu0 0.0
      %815 = vmatpush1.msra.mxu0 0.0
      %816 = vmatprep.subr.mxu0 0.0
      %817 = vmatpush1.msra.mxu0 0.0
      %818 = vmatprep.subr.mxu0 0.0
      %819 = vmatpush1.msra.mxu0 0.0
      %820 = vmatprep.subr.mxu0 0.0
      %821 = vmatpush1.msra.mxu0 0.0
      %822 = vmatprep.subr.mxu0 0.0
      %823 = vmatpush1.msra.mxu0 0.0
      %824 = vmatprep.subr.mxu0 0.0
      %825 = vmatpush1.msra.mxu0 0.0
      %826 = vmatprep.subr.mxu0 0.0
      %827 = vmatpush1.msra.mxu0 %v245
      %828 = vmatprep.subr.mxu0 0.0
      %829 = vmatpush1.msra.mxu0 %v244
      %830 = vmatprep.subr.mxu0 0.0
      %831 = vmatpush2.msra.mxu0 0.0
      %832 = vmatprep.subr.mxu0 0.0
      %833 = vmatpush2.msra.mxu0 0.0
      %834 = vmatprep.subr.mxu0 0.0
      %835 = vmatpush2.msra.mxu0 0.0
      %836 = vmatprep.subr.mxu0 0.0
      %837 = vmatpush2.msra.mxu0 0.0
      %838 = vmatprep.subr.mxu0 0.0
      %839 = vmatpush2.msra.mxu0 0.0
      %840 = vmatprep.subr.mxu0 0.0
      %841 = vmatpush2.msra.mxu0 0.0
      %842 = vmatprep.subr.mxu0 0.0
      %843 = vmatpush2.msra.mxu0 0.0
      %844 = vmatprep.subr.mxu0 0.0
      %845 = vmatpush2.msra.mxu0 0.0
      %846 = vmatprep.subr.mxu0 0.0
      %847 = vmatpush2.msra.mxu0 0.0
      %848 = vmatprep.subr.mxu0 0.0
      %849 = vmatpush2.msra.mxu0 0.0
      %850 = vmatprep.subr.mxu0 0.0
      %851 = vmatpush2.msra.mxu0 0.0
      %852 = vmatprep.subr.mxu0 0.0
      %853 = vmatpush2.msra.mxu0 0.0
      %854 = vmatprep.subr.mxu0 0.0
      %855 = vmatpush2.msra.mxu0 0.0
      %856 = vmatprep.subr.mxu0 0.0
      %857 = vmatpush2.msra.mxu0 0.0
      %858 = vmatprep.subr.mxu0 0.0
      %859 = vmatpush2.msra.mxu0 0.0
      %860 = vmatprep.subr.mxu0 0.0
      %861 = vmatpush2.msra.mxu0 0.0
      %862 = vmatprep.mubr.f32.mxu0 0.0
      %863 = vmatmul.mubr.f32.gmra.mxu0 %v793
      %v864 = vpop.f32.mrf.mxu0
      %v865 = vadd.f32 0.0, %v864
      %v866 = vpop.f32.mrf.mxu0
      %867 = vmatprep.mubr.f32.mxu0 0.0
      %868 = vmatmul.mubr.f32.gmra.mxu0 %v796
      %v869 = vpop.f32.mrf.mxu0
      %v870 = vadd.f32 0.0, %v869
      %v871 = vpop.f32.mrf.mxu0
      %872 = vdwg.mxu0
      %v874 = vsel %vm622, %v704, 0
      %v877 = vsel %vm622, %v706, 0
      %879 = vmatprep.subr.mxu0 0.0
      %880 = vmatpush1.msra.mxu0 0.0
      %881 = vmatprep.subr.mxu0 0.0
      %882 = vmatpush1.msra.mxu0 0.0
      %883 = vmatprep.subr.mxu0 0.0
      %884 = vmatpush1.msra.mxu0 0.0
      %885 = vmatprep.subr.mxu0 0.0
      %886 = vmatpush1.msra.mxu0 0.0
      %887 = vmatprep.subr.mxu0 0.0
      %888 = vmatpush1.msra.mxu0 0.0
      %889 = vmatprep.subr.mxu0 0.0
      %890 = vmatpush1.msra.mxu0 0.0
      %891 = vmatprep.subr.mxu0 0.0
      %892 = vmatpush1.msra.mxu0 0.0
      %893 = vmatprep.subr.mxu0 0.0
      %894 = vmatpush1.msra.mxu0 0.0
      %895 = vmatprep.subr.mxu0 0.0
      %896 = vmatpush1.msra.mxu0 0.0
      %897 = vmatprep.subr.mxu0 0.0
      %898 = vmatpush1.msra.mxu0 0.0
      %899 = vmatprep.subr.mxu0 0.0
      %900 = vmatpush1.msra.mxu0 0.0
      %901 = vmatprep.subr.mxu0 0.0
      %902 = vmatpush1.msra.mxu0 0.0
      %903 = vmatprep.subr.mxu0 0.0
      %904 = vmatpush1.msra.mxu0 0.0
      %905 = vmatprep.subr.mxu0 0.0
      %906 = vmatpush1.msra.mxu0 0.0
      %907 = vmatprep.subr.mxu0 0.0
      %908 = vmatpush1.msra.mxu0 %v247
      %909 = vmatprep.subr.mxu0 0.0
      %910 = vmatpush1.msra.mxu0 %v246
      %911 = vmatprep.subr.mxu0 0.0
      %912 = vmatpush2.msra.mxu0 0.0
      %913 = vmatprep.subr.mxu0 0.0
      %914 = vmatpush2.msra.mxu0 0.0
      %915 = vmatprep.subr.mxu0 0.0
      %916 = vmatpush2.msra.mxu0 0.0
      %917 = vmatprep.subr.mxu0 0.0
      %918 = vmatpush2.msra.mxu0 0.0
      %919 = vmatprep.subr.mxu0 0.0
      %920 = vmatpush2.msra.mxu0 0.0
      %921 = vmatprep.subr.mxu0 0.0
      %922 = vmatpush2.msra.mxu0 0.0
      %923 = vmatprep.subr.mxu0 0.0
      %924 = vmatpush2.msra.mxu0 0.0
      %925 = vmatprep.subr.mxu0 0.0
      %926 = vmatpush2.msra.mxu0 0.0
      %927 = vmatprep.subr.mxu0 0.0
      %928 = vmatpush2.msra.mxu0 0.0
      %929 = vmatprep.subr.mxu0 0.0
      %930 = vmatpush2.msra.mxu0 0.0
      %931 = vmatprep.subr.mxu0 0.0
      %932 = vmatpush2.msra.mxu0 0.0
      %933 = vmatprep.subr.mxu0 0.0
      %934 = vmatpush2.msra.mxu0 0.0
      %935 = vmatprep.subr.mxu0 0.0
      %936 = vmatpush2.msra.mxu0 0.0
      %937 = vmatprep.subr.mxu0 0.0
      %938 = vmatpush2.msra.mxu0 0.0
      %939 = vmatprep.subr.mxu0 0.0
      %940 = vmatpush2.msra.mxu0 0.0
      %941 = vmatprep.subr.mxu0 0.0
      %942 = vmatpush2.msra.mxu0 0.0
      %943 = vmatprep.mubr.f32.mxu0 0.0
      %944 = vmatmul.mubr.f32.gmra.mxu0 %v874
      %v945 = vpop.f32.mrf.mxu0
      %v946 = vadd.f32 0.0, %v945
      %v947 = vpop.f32.mrf.mxu0
      %948 = vmatprep.mubr.f32.mxu0 0.0
      %949 = vmatmul.mubr.f32.gmra.mxu0 %v877
      %v950 = vpop.f32.mrf.mxu0
      %v951 = vadd.f32 0.0, %v950
      %v952 = vpop.f32.mrf.mxu0
      %953 = vdwg.mxu0
      %v955 = vsel %vm622, %v708, 0
      %v958 = vsel %vm622, %v710, 0
      %960 = vmatprep.subr.mxu0 0.0
      %961 = vmatpush1.msra.mxu0 0.0
      %962 = vmatprep.subr.mxu0 0.0
      %963 = vmatpush1.msra.mxu0 0.0
      %964 = vmatprep.subr.mxu0 0.0
      %965 = vmatpush1.msra.mxu0 0.0
      %966 = vmatprep.subr.mxu0 0.0
      %967 = vmatpush1.msra.mxu0 0.0
      %968 = vmatprep.subr.mxu0 0.0
      %969 = vmatpush1.msra.mxu0 0.0
      %970 = vmatprep.subr.mxu0 0.0
      %971 = vmatpush1.msra.mxu0 0.0
      %972 = vmatprep.subr.mxu0 0.0
      %973 = vmatpush1.msra.mxu0 0.0
      %974 = vmatprep.subr.mxu0 0.0
      %975 = vmatpush1.msra.mxu0 0.0
      %976 = vmatprep.subr.mxu0 0.0
      %977 = vmatpush1.msra.mxu0 0.0
      %978 = vmatprep.subr.mxu0 0.0
      %979 = vmatpush1.msra.mxu0 0.0
      %980 = vmatprep.subr.mxu0 0.0
      %981 = vmatpush1.msra.mxu0 0.0
      %982 = vmatprep.subr.mxu0 0.0
      %983 = vmatpush1.msra.mxu0 0.0
      %984 = vmatprep.subr.mxu0 0.0
      %985 = vmatpush1.msra.mxu0 0.0
      %986 = vmatprep.subr.mxu0 0.0
      %987 = vmatpush1.msra.mxu0 0.0
      %988 = vmatprep.subr.mxu0 0.0
      %989 = vmatpush1.msra.mxu0 %v249
      %990 = vmatprep.subr.mxu0 0.0
      %991 = vmatpush1.msra.mxu0 %v248
      %992 = vmatprep.subr.mxu0 0.0
      %993 = vmatpush2.msra.mxu0 0.0
      %994 = vmatprep.subr.mxu0 0.0
      %995 = vmatpush2.msra.mxu0 0.0
      %996 = vmatprep.subr.mxu0 0.0
      %997 = vmatpush2.msra.mxu0 0.0
      %998 = vmatprep.subr.mxu0 0.0
      %999 = vmatpush2.msra.mxu0 0.0
      %1000 = vmatprep.subr.mxu0 0.0
      %1001 = vmatpush2.msra.mxu0 0.0
      %1002 = vmatprep.subr.mxu0 0.0
      %1003 = vmatpush2.msra.mxu0 0.0
      %1004 = vmatprep.subr.mxu0 0.0
      %1005 = vmatpush2.msra.mxu0 0.0
      %1006 = vmatprep.subr.mxu0 0.0
      %1007 = vmatpush2.msra.mxu0 0.0
      %1008 = vmatprep.subr.mxu0 0.0
      %1009 = vmatpush2.msra.mxu0 0.0
      %1010 = vmatprep.subr.mxu0 0.0
      %1011 = vmatpush2.msra.mxu0 0.0
      %1012 = vmatprep.subr.mxu0 0.0
      %1013 = vmatpush2.msra.mxu0 0.0
      %1014 = vmatprep.subr.mxu0 0.0
      %1015 = vmatpush2.msra.mxu0 0.0
      %1016 = vmatprep.subr.mxu0 0.0
      %1017 = vmatpush2.msra.mxu0 0.0
      %1018 = vmatprep.subr.mxu0 0.0
      %1019 = vmatpush2.msra.mxu0 0.0
      %1020 = vmatprep.subr.mxu0 0.0
      %1021 = vmatpush2.msra.mxu0 0.0
      %1022 = vmatprep.subr.mxu0 0.0
      %1023 = vmatpush2.msra.mxu0 0.0
      %1024 = vmatprep.mubr.f32.mxu0 0.0
      %1025 = vmatmul.mubr.f32.gmra.mxu0 %v955
      %v1026 = vpop.f32.mrf.mxu0
      %v1027 = vadd.f32 0.0, %v1026
      %v1028 = vpop.f32.mrf.mxu0
      %1029 = vmatprep.mubr.f32.mxu0 0.0
      %1030 = vmatmul.mubr.f32.gmra.mxu0 %v958
      %v1031 = vpop.f32.mrf.mxu0
      %v1032 = vadd.f32 0.0, %v1031
      %v1033 = vpop.f32.mrf.mxu0
      %1034 = vdwg.mxu0
      %1035 = vst.msk [vmem:[%s225] sm:$0xff] %vm250, %v784
      %1036 = vst.msk [vmem:[%s225 + $0x8] sm:$0xff] %vm250, %v789
      %1039 = vrot.lane.b32.xlu0 %v865, 32
      %v1040 = vpop.permute.xlu0 %1039
      %1041 = vrot.lane.b32.xlu0 %v870, 32
      %v1042 = vpop.permute.xlu0 %1041
      %vm1045 = vcmask 523520
      %1046 = vst.msk [vmem:[%s225] sm:$0xff] %vm1045, %v1040
      %1047 = vst.msk [vmem:[%s225 + $0x8] sm:$0xff] %vm1045, %v1042
      %1050 = vrot.lane.b32.xlu0 %v946, 64
      %v1051 = vpop.permute.xlu0 %1050
      %1052 = vrot.lane.b32.xlu0 %v951, 64
      %v1053 = vpop.permute.xlu0 %1052
      %vm1056 = vcmask 785920
      %1057 = vst.msk [vmem:[%s225] sm:$0xff] %vm1056, %v1051
      %1058 = vst.msk [vmem:[%s225 + $0x8] sm:$0xff] %vm1056, %v1053
      %1061 = vrot.lane.b32.xlu0 %v1027, 96
      %v1062 = vpop.permute.xlu0 %1061
      %1063 = vrot.lane.b32.xlu0 %v1032, 96
      %v1064 = vpop.permute.xlu0 %1063
      %vm1067 = vcmask 1048320
      %1068 = vst.msk [vmem:[%s225] sm:$0xff] %vm1067, %v1062
      %1069 = vst.msk [vmem:[%s225 + $0x8] sm:$0xff] %vm1067, %v1064
      %p1070 = scmp.lt.s32.totalorder %s14, 1
      %s1071 = scalar_select %p1070, %s14, 1
      %s1072 = smul.addr %s1071, 2
      %s1073 = smul.addr %s1072, 8
      %s1074 = scalar_lea.vmem %s3, %s1073
      // Predicated region
      $region33: #{full_attention.1} parent=31 // pred_check
        %p1075 = pneg %p110
      $region34: #{full_attention.1} parent=31 // pred_check_branch
        %1077 = sbr.rel (%p1075) target = $region36
      $region35: #{full_attention.1} parent=31 // pred_region
        _
      $region36: #{full_attention.1} parent=31 // pred_fallthru
        _
    $region32: #{full_attention.1} parent=5 // pred_fallthru
      _
    %p1078 = scmp.le.s32.totalorder 2, %s9
    // Predicated region
    $region37: #{full_attention.1} parent=5 // pred_check
      %p1079 = pneg %p1078
    $region38: #{full_attention.1} parent=5 // pred_check_branch
      %1081 = sbr.rel (%p1079) target = $region40
    $region39: #{full_attention.1} parent=5 // pred_region
      %s1082 = ssub.s32 %s9, 2
      // Predicated region
      $region41: #{full_attention.1} parent=39 // pred_check
        %p1083 = pneg %p116
      $region42: #{full_attention.1} parent=39 // pred_check_branch
        %1085 = sbr.rel (%p1083) target = $region44
      $region43: #{full_attention.1} parent=39 // pred_region
        %p1086 = scmp.lt.s32.totalorder %s15, 1
        %s1087 = scalar_select %p1086, %s15, 1
        %s1088 = smul.addr %s1087, 2
        %s1089 = smul.addr %s1088, 8
        %s1090 = scalar_lea.vmem %s3, %s1089
      $region44: #{full_attention.1} parent=39 // pred_fallthru
        _
    $region40: #{full_attention.1} parent=5 // pred_fallthru
      _
  $region6: #{full_attention.1} parent=0 // loop_footer
    %s13 = sadd.s32 1, %s9
  $region7: #{full_attention.1} parent=0 // loop_footer_branch
    %8 = sbr.rel target = $region3
  $region8: #{full_attention.1} parent=0 // loop_exit
    _

</llo_original>
